<compile_context>
chip_gen: v7x
topology: tpu7x:2x2x1
jax: 0.10.0
libtpu: 0.0.40
codegen_flags: <defaults>
</compile_context>

<pallas_src>
import jax
import jax.numpy as jnp
from jax.experimental import pallas as pl
from jax.experimental.pallas import tpu as pltpu

D_IN, D_HID, D_OUT = 512, 256, 2


def _round_up(n, m):
    return ((n + m - 1) // m) * m


def _mlp_kernel(x_ref, w1_ref, b1_ref, w2_ref, b2_ref, o_ref):
    # In-kernel bf16 cast of x: halves end-to-end x HBM traffic vs. casting in the wrapper.
    x_bf = x_ref[...].astype(jnp.bfloat16)                                   # (TB, 512)
    h = jnp.dot(x_bf, w1_ref[...], preferred_element_type=jnp.float32)       # (TB, 256) f32 acc
    h = jnp.tanh(h + b1_ref[...])                                            # bias + EUP tanh (f32)
    # bf16 operands for the tiny second layer (tanh output is in [-1,1] -> bf16-safe).
    o = jnp.dot(h.astype(jnp.bfloat16), w2_ref[...],
                preferred_element_type=jnp.float32)                          # (TB, 2)
    o_ref[...] = (o + b2_ref[...]).astype(o_ref.dtype)


def ratio_estimator_forward(x, w1, b1, w2, b2, *, tb=2048):
    """Forward pass of ratio_estimator. x: (B, 512) -> (B, 2)."""
    B = x.shape[0]
    out_dtype = x.dtype

    # Small weight-side casts/reshapes only (w1: 256 KiB bf16, w2: 1 KiB). x stays native.
    w1_bf = w1.astype(jnp.bfloat16)
    b1_f = b1.astype(jnp.float32).reshape(1, D_HID)
    w2_bf = w2.astype(jnp.bfloat16)
    b2_f = b2.astype(jnp.float32).reshape(1, D_OUT)

    # Batch tile: multiple of 8 (sublane rule); capped at ~ceil(B/2) so there are >=2 tiles
    # for the "parallel" axis to shard across v7x's two TensorCores. No physical padding:
    # the last tile may be ragged; Pallas masks out-of-bounds output rows.
    tb = max(8, min(tb, _round_up(pl.cdiv(B, 2), 8)))
    grid = (pl.cdiv(B, tb),)

    cost = pl.CostEstimate(
        flops=2 * B * D_IN * D_HID + 2 * B * D_HID * D_OUT,
        transcendentals=B * D_HID,
        bytes_accessed=(B * D_IN * x.dtype.itemsize     # x read once, native dtype
                        + D_IN * D_HID * 2              # w1 (bf16)
                        + D_HID * 4                     # b1 (f32)
                        + D_HID * D_OUT * 2             # w2 (bf16)
                        + D_OUT * 4                     # b2 (f32)
                        + B * D_OUT * 4),               # out (f32)
    )

    out = pl.pallas_call(
        _mlp_kernel,
        out_shape=jax.ShapeDtypeStruct((B, D_OUT), jnp.float32),
        grid_spec=pltpu.PrefetchScalarGridSpec(
            num_scalar_prefetch=0,
            grid=grid,
            in_specs=[
                pl.BlockSpec((tb, D_IN), lambda i: (i, 0)),        # x: streamed over batch
                pl.BlockSpec((D_IN, D_HID), lambda i: (0, 0)),     # w1: VMEM-resident
                pl.BlockSpec((1, D_HID), lambda i: (0, 0)),        # b1
                pl.BlockSpec((D_HID, D_OUT), lambda i: (0, 0)),    # w2
                pl.BlockSpec((1, D_OUT), lambda i: (0, 0)),        # b2
            ],
            out_specs=pl.BlockSpec((tb, D_OUT), lambda i: (i, 0)),
        ),
        compiler_params=pltpu.CompilerParams(
            dimension_semantics=("parallel",)),   # independent batch tiles -> v7x dual-TC
        cost_estimate=cost,
    )(x, w1_bf, b1_f, w2_bf, b2_f)

    return out.astype(out_dtype)


def init_params(key):
    # Deterministic init mimicking PyTorch nn.Linear default (uniform(-1/sqrt(fan_in), +)).
    k1, k2, k3, k4 = jax.random.split(key, 4)
    bnd1 = 1.0 / jnp.sqrt(D_IN)
    bnd2 = 1.0 / jnp.sqrt(D_HID)
    w1 = jax.random.uniform(k1, (D_IN, D_HID), jnp.float32, -bnd1, bnd1)
    b1 = jax.random.uniform(k2, (D_HID,), jnp.float32, -bnd1, bnd1)
    w2 = jax.random.uniform(k3, (D_HID, D_OUT), jnp.float32, -bnd2, bnd2)
    b2 = jax.random.uniform(k4, (D_OUT,), jnp.float32, -bnd2, bnd2)
    return w1, b1, w2, b2


if __name__ == "__main__":
    key = jax.random.PRNGKey(0)
    kx, kp = jax.random.split(key)
    # B=20 deliberately not a multiple of the tile so the ragged-last-block path is exercised
    # (tb clamps to 16 here -> grid of 2, last tile has 4 valid rows).
    B = 20
    x = jax.random.normal(kx, (B, D_IN), jnp.float32)
    w1, b1, w2, b2 = init_params(kp)

    out = ratio_estimator_forward(x, w1, b1, w2, b2)
    out = jax.block_until_ready(out)

    # Pure-JAX reference reproducing the kernel's bf16 roundings.
    x_r = x.astype(jnp.bfloat16).astype(jnp.float32)
    w1_r = w1.astype(jnp.bfloat16).astype(jnp.float32)
    h = jnp.tanh(x_r @ w1_r + b1[None, :])
    h_r = h.astype(jnp.bfloat16).astype(jnp.float32)
    w2_r = w2.astype(jnp.bfloat16).astype(jnp.float32)
    ref = h_r @ w2_r + b2[None, :]

    assert out.shape == (B, D_OUT)
    assert jnp.allclose(out, ref, atol=1e-2, rtol=1e-2), (
        f"max abs err {jnp.max(jnp.abs(out - ref))}")
    print("KERNEL_OK")
</pallas_src>

<mosaic_0001>
module attributes {stable_mosaic.version = 11 : i64} {
  func.func @_mlp_kernel(%arg0: i32, %arg1: memref<16x512xf32, #tpu.memory_space<vmem>>, %arg2: memref<512x256xbf16, #tpu.memory_space<vmem>>, %arg3: memref<1x256xf32, #tpu.memory_space<vmem>>, %arg4: memref<256x2xbf16, #tpu.memory_space<vmem>>, %arg5: memref<1x2xf32, #tpu.memory_space<vmem>>, %arg6: memref<16x2xf32, #tpu.memory_space<vmem>>) attributes {dimension_semantics = [#tpu.dimension_semantics<parallel>], iteration_bounds = array<i64: 2>, scalar_prefetch = 0 : i64, scratch_operands = 0 : i64, tpu.core_type = #tpu.core_type<tc>, window_params = [{transform_indices = @transform_0, window_bounds = array<i64: 16, 512>}, {pipeline_mode = #tpu.pipeline_mode<synchronous>, transform_indices = @transform_1, window_bounds = array<i64: 512, 256>}, {pipeline_mode = #tpu.pipeline_mode<synchronous>, transform_indices = @transform_2, window_bounds = array<i64: 1, 256>}, {pipeline_mode = #tpu.pipeline_mode<synchronous>, transform_indices = @transform_3, window_bounds = array<i64: 256, 2>}, {pipeline_mode = #tpu.pipeline_mode<synchronous>, transform_indices = @transform_4, window_bounds = array<i64: 1, 2>}, {transform_indices = @transform_5, window_bounds = array<i64: 16, 2>}]} {
    %c0 = arith.constant 0 : index
    %c0_0 = arith.constant 0 : index
    %0 = vector.load %arg1[%c0, %c0_0] : memref<16x512xf32, #tpu.memory_space<vmem>>, vector<16x512xf32>
    %1 = arith.truncf %0 : vector<16x512xf32> to vector<16x512xbf16>
    %c0_1 = arith.constant 0 : index
    %c0_2 = arith.constant 0 : index
    %2 = vector.load %arg2[%c0_1, %c0_2] : memref<512x256xbf16, #tpu.memory_space<vmem>>, vector<512x256xbf16>
    %cst = arith.constant dense<0.000000e+00> : vector<16x256xf32>
    %3 = tpu.matmul %1, %2, %cst {dimension_numbers = #tpu.dot_dimension_numbers<[1], [0], [0], [1], [0, 0, 1, 1], [], []>} : vector<16x512xbf16>, vector<512x256xbf16>, vector<16x256xf32> -> vector<16x256xf32>
    %c0_3 = arith.constant 0 : index
    %c0_4 = arith.constant 0 : index
    %4 = vector.load %arg3[%c0_3, %c0_4] : memref<1x256xf32, #tpu.memory_space<vmem>>, vector<1x256xf32>
    %5 = vector.broadcast %4 : vector<1x256xf32> to vector<16x256xf32>
    %6 = arith.addf %3, %5 : vector<16x256xf32>
    %7 = math.tanh %6 : vector<16x256xf32>
    %8 = arith.truncf %7 : vector<16x256xf32> to vector<16x256xbf16>
    %c0_5 = arith.constant 0 : index
    %c0_6 = arith.constant 0 : index
    %9 = vector.load %arg4[%c0_5, %c0_6] : memref<256x2xbf16, #tpu.memory_space<vmem>>, vector<256x2xbf16>
    %cst_7 = arith.constant dense<0.000000e+00> : vector<16x2xf32>
    %10 = tpu.matmul %8, %9, %cst_7 {dimension_numbers = #tpu.dot_dimension_numbers<[1], [0], [0], [1], [0, 0, 1, 1], [], []>} : vector<16x256xbf16>, vector<256x2xbf16>, vector<16x2xf32> -> vector<16x2xf32>
    %c0_8 = arith.constant 0 : index
    %c0_9 = arith.constant 0 : index
    %11 = vector.load %arg5[%c0_8, %c0_9] : memref<1x2xf32, #tpu.memory_space<vmem>>, vector<1x2xf32>
    %12 = vector.broadcast %11 : vector<1x2xf32> to vector<16x2xf32>
    %13 = arith.addf %10, %12 : vector<16x2xf32>
    %c0_10 = arith.constant 0 : index
    %c0_11 = arith.constant 0 : index
    %14 = vector.load %arg6[%c0_10, %c0_11] : memref<16x2xf32, #tpu.memory_space<vmem>>, vector<16x2xf32>
    tpu.vector_store %arg6[%c0_10, %c0_11], %13 {strides = array<i32>} : memref<16x2xf32, #tpu.memory_space<vmem>>, vector<16x2xf32>,
    return
  }
  func.func @transform_0(%arg0: i32) -> (i32, i32) {
    %c0_i32 = arith.constant 0 : i32
    %c0_i32_0 = arith.constant 0 : i32
    return %arg0, %c0_i32 : i32, i32
  }
  func.func @transform_1(%arg0: i32) -> (i32, i32) {
    %c0_i32 = arith.constant 0 : i32
    %c0_i32_0 = arith.constant 0 : i32
    %c0_i32_1 = arith.constant 0 : i32
    return %c0_i32, %c0_i32_0 : i32, i32
  }
  func.func @transform_2(%arg0: i32) -> (i32, i32) {
    %c0_i32 = arith.constant 0 : i32
    %c0_i32_0 = arith.constant 0 : i32
    %c0_i32_1 = arith.constant 0 : i32
    return %c0_i32, %c0_i32_0 : i32, i32
  }
  func.func @transform_3(%arg0: i32) -> (i32, i32) {
    %c0_i32 = arith.constant 0 : i32
    %c0_i32_0 = arith.constant 0 : i32
    %c0_i32_1 = arith.constant 0 : i32
    return %c0_i32, %c0_i32_0 : i32, i32
  }
  func.func @transform_4(%arg0: i32) -> (i32, i32) {
    %c0_i32 = arith.constant 0 : i32
    %c0_i32_0 = arith.constant 0 : i32
    %c0_i32_1 = arith.constant 0 : i32
    return %c0_i32, %c0_i32_0 : i32, i32
  }
  func.func @transform_5(%arg0: i32) -> (i32, i32) {
    %c0_i32 = arith.constant 0 : i32
    %c0_i32_0 = arith.constant 0 : i32
    return %arg0, %c0_i32 : i32, i32
  }
}

</mosaic_0001>

<llo_original>
// kernel: tpu_custom_call.1
$region0: #{tpu_custom_call.1}
  #allocation0 [shape = 'u32[]', space=smem, size = 0x4, offset = 0x4, fixed_abs, tag = 'smem constant byte address 0x4 - core index']
  #allocation1 [shape = 'u32[144,128]{1,0:T(1,128)}', space=vmem, size = 0x12000, scoped, tag = 'internal scratch']
  %s0 = inlined_call_operand.vmem [shape: f32[20,512], index: 0, kind: input, shape index: {}]
  %s1 = inlined_call_operand.hbm [shape: bf16[512,256], index: 1, kind: input, shape index: {}]
  %s2 = inlined_call_operand.vmem [shape: f32[1,256], index: 2, kind: input, shape index: {}]
  %s3 = inlined_call_operand.vmem [shape: bf16[256,2], index: 3, kind: input, shape index: {}]
  %s4 = inlined_call_operand.vmem [shape: f32[1,2], index: 4, kind: input, shape index: {}]
  %s5 = inlined_call_operand.vmem [shape: f32[20,2], index: 5, kind: output, shape index: {}]
  %s6 = sld [smem:[#allocation0]]
  $region105: #{tpu_custom_call.1} parent=0
    _
  %s8 = ssub.s32 1, %s6
  %s9 = scalar_select 0, %s8, %s6
  $region1: #{tpu_custom_call.1} parent=0
    #allocation2 [shape = 'u8[262144]{0}', space=vmem, size = 0x40000, scoped, tag = 'input window, operand 1, single buffered']
    #allocation3 [shape = 's32[2]{0}', space=sflag, size = 0x8, scoped, tag = 'scoped memory for tpu_custom_call.1']
    #allocation4 [shape = 'u8[16384]{0}', space=vmem, size = 0x4000, scoped, tag = 'output window, operand 0']
    %10 = vsyncpa [#allocation3], 0
    loop: start=0, step=1, limit=4
    $region2: #{tpu_custom_call.1} parent=1 // loop_pre_header
      _
    $region3: #{tpu_custom_call.1} parent=1 // loop_header
      %s12 = sphi 0, %s16
      %p13 = scmp.ge.s32.totalorder %s12, 4
      %s22 = sphi 0, %s24
      %s25 = sphi 0, %s22
      %s26 = sphi 0, %s25
      %s42 = sphi 0, %s26
      %s46 = sphi 0, %s46
      %s48 = sphi 0, %s46
      %s49 = sphi 0, %s48
      %s63 = sphi 0, %s49
      %s67 = sphi 0, %s67
      %s69 = sphi 0, %s67
      %s70 = sphi 0, %s69
      %s84 = sphi 0, %s70
      %s88 = sphi 0, %s88
      %s90 = sphi 0, %s88
      %s91 = sphi 0, %s90
      %s105 = sphi 0, %s91
      %s109 = sphi 0, %s109
      %s111 = sphi 0, %s109
      %s112 = sphi 0, %s111
      %s126 = sphi 0, %s112
      %s132 = sphi 0, %s134
      %s135 = sphi 0, %s132
      %s136 = sphi 0, %s135
      %s152 = sphi 0, %s136
    $region4: #{tpu_custom_call.1} parent=1 // loop_header_branch
      %15 = sbr.rel (%p13) target = $region8
    $region5: #{tpu_custom_call.1} parent=1 // loop_body
      %s17 = ssub.s32 %s12, 1
      %s18 = ssub.s32 %s12, 2
      %s19 = sadd.s32 %s12, 1
      %s20 = ssub.s32 %s12, %s19
      %p21 = scmp.eq.s32.totalorder %s20, 0
      %s23 = sadd.s32 %s22, 1
      %s24 = scalar_select %p21, %s22, %s23
      %p27 = pneg %p21
      %p28 = scmp.eq.s32.totalorder %s12, 1
      %p29 = por %p27, %p28
      %p30 = scmp.ne.s32.totalorder %s22, %s25
      %p31 = scmp.eq.s32.totalorder %s12, 0
      %p32 = por %p30, %p31
      %p33 = scmp.ne.s32.totalorder %s22, %s25
      %p34 = scmp.eq.s32.totalorder %s17, 1
      %p35 = por %p33, %p34
      %p36 = scmp.ne.s32.totalorder %s25, %s26
      %p37 = scmp.eq.s32.totalorder %s17, 0
      %p38 = por %p36, %p37
      %p39 = scmp.ne.s32.totalorder %s25, %s26
      %p40 = scmp.eq.s32.totalorder %s18, 1
      %p41 = por %p39, %p40
      %p43 = scmp.ne.s32.totalorder %s26, %s42
      %p44 = scmp.eq.s32.totalorder %s18, 0
      %p45 = por %p43, %p44
      %s47 = sadd.s32 %s46, 1
      %p50 = scmp.eq.s32.totalorder %s12, 1
      %p51 = scmp.ne.s32.totalorder %s46, %s48
      %p52 = scmp.eq.s32.totalorder %s12, 0
      %p53 = por %p51, %p52
      %p54 = scmp.ne.s32.totalorder %s46, %s48
      %p55 = scmp.eq.s32.totalorder %s17, 1
      %p56 = por %p54, %p55
      %p57 = scmp.ne.s32.totalorder %s48, %s49
      %p58 = scmp.eq.s32.totalorder %s17, 0
      %p59 = por %p57, %p58
      %p60 = scmp.ne.s32.totalorder %s48, %s49
      %p61 = scmp.eq.s32.totalorder %s18, 1
      %p62 = por %p60, %p61
      %p64 = scmp.ne.s32.totalorder %s49, %s63
      %p65 = scmp.eq.s32.totalorder %s18, 0
      %p66 = por %p64, %p65
      %s68 = sadd.s32 %s67, 1
      %p71 = scmp.eq.s32.totalorder %s12, 1
      %p72 = scmp.ne.s32.totalorder %s67, %s69
      %p73 = scmp.eq.s32.totalorder %s12, 0
      %p74 = por %p72, %p73
      %p75 = scmp.ne.s32.totalorder %s67, %s69
      %p76 = scmp.eq.s32.totalorder %s17, 1
      %p77 = por %p75, %p76
      %p78 = scmp.ne.s32.totalorder %s69, %s70
      %p79 = scmp.eq.s32.totalorder %s17, 0
      %p80 = por %p78, %p79
      %p81 = scmp.ne.s32.totalorder %s69, %s70
      %p82 = scmp.eq.s32.totalorder %s18, 1
      %p83 = por %p81, %p82
      %p85 = scmp.ne.s32.totalorder %s70, %s84
      %p86 = scmp.eq.s32.totalorder %s18, 0
      %p87 = por %p85, %p86
      %s89 = sadd.s32 %s88, 1
      %p92 = scmp.eq.s32.totalorder %s12, 1
      %p93 = scmp.ne.s32.totalorder %s88, %s90
      %p94 = scmp.eq.s32.totalorder %s12, 0
      %p95 = por %p93, %p94
      %p96 = scmp.ne.s32.totalorder %s88, %s90
      %p97 = scmp.eq.s32.totalorder %s17, 1
      %p98 = por %p96, %p97
      %p99 = scmp.ne.s32.totalorder %s90, %s91
      %p100 = scmp.eq.s32.totalorder %s17, 0
      %p101 = por %p99, %p100
      %p102 = scmp.ne.s32.totalorder %s90, %s91
      %p103 = scmp.eq.s32.totalorder %s18, 1
      %p104 = por %p102, %p103
      %p106 = scmp.ne.s32.totalorder %s91, %s105
      %p107 = scmp.eq.s32.totalorder %s18, 0
      %p108 = por %p106, %p107
      %s110 = sadd.s32 %s109, 1
      %p113 = scmp.eq.s32.totalorder %s12, 1
      %p114 = scmp.ne.s32.totalorder %s109, %s111
      %p115 = scmp.eq.s32.totalorder %s12, 0
      %p116 = por %p114, %p115
      %p117 = scmp.ne.s32.totalorder %s109, %s111
      %p118 = scmp.eq.s32.totalorder %s17, 1
      %p119 = por %p117, %p118
      %p120 = scmp.ne.s32.totalorder %s111, %s112
      %p121 = scmp.eq.s32.totalorder %s17, 0
      %p122 = por %p120, %p121
      %p123 = scmp.ne.s32.totalorder %s111, %s112
      %p124 = scmp.eq.s32.totalorder %s18, 1
      %p125 = por %p123, %p124
      %p127 = scmp.ne.s32.totalorder %s112, %s126
      %p128 = scmp.eq.s32.totalorder %s18, 0
      %p129 = por %p127, %p128
      %s130 = ssub.s32 %s12, %s19
      %p131 = scmp.eq.s32.totalorder %s130, 0
      %s133 = sadd.s32 %s132, 1
      %s134 = scalar_select %p131, %s132, %s133
      %p137 = pneg %p131
      %p138 = scmp.eq.s32.totalorder %s12, 1
      %p139 = por %p137, %p138
      %p140 = scmp.ne.s32.totalorder %s132, %s135
      %p141 = scmp.eq.s32.totalorder %s12, 0
      %p142 = por %p140, %p141
      %p143 = scmp.ne.s32.totalorder %s132, %s135
      %p144 = scmp.eq.s32.totalorder %s17, 1
      %p145 = por %p143, %p144
      %p146 = scmp.ne.s32.totalorder %s135, %s136
      %p147 = scmp.eq.s32.totalorder %s17, 0
      %p148 = por %p146, %p147
      %p149 = scmp.ne.s32.totalorder %s135, %s136
      %p150 = scmp.eq.s32.totalorder %s18, 1
      %p151 = por %p149, %p150
      %p153 = scmp.ne.s32.totalorder %s136, %s152
      %p154 = scmp.eq.s32.totalorder %s18, 0
      %p155 = por %p153, %p154
      %p156 = scmp.le.s32.totalorder 1, %s12
      %p157 = scmp.lt.s32.totalorder %s12, 3
      %p158 = pnand %p156, %p157
      %p159 = pneg %p158
      // Predicated region
      $region9: #{tpu_custom_call.1} parent=5 // pred_check
        _
      $region10: #{tpu_custom_call.1} parent=5 // pred_check_branch
        %161 = sbr.rel (%p158) target = $region12
      $region11: #{tpu_custom_call.1} parent=5 // pred_region
        %s162 = ssub.s32 %s12, 1
        // Predicated region
        $region13: #{tpu_custom_call.1} parent=11 // pred_check
          %p163 = pneg %p59
        $region14: #{tpu_custom_call.1} parent=11 // pred_check_branch
          %165 = sbr.rel (%p163) target = $region16
        $region15: #{tpu_custom_call.1} parent=11 // pred_region
          %s167 = ssub.s32 8192, 8192
          %168 = vsyncadd [#allocation3], %s167
          %s169 = sshll.u32 [#allocation2], 4
          %s170 = int_to_ptr.vmem [resolvable:$true] %s169
          %175 = dma.hbm_to_vmem [thread:$0]  %s1, 8192, %s170, [#allocation3], 128, 128, 8
        $region16: #{tpu_custom_call.1} parent=11 // pred_fallthru
          _
        // Predicated region
        $region17: #{tpu_custom_call.1} parent=11 // pred_check
          %p176 = pneg %p80
        $region18: #{tpu_custom_call.1} parent=11 // pred_check_branch
          %178 = sbr.rel (%p176) target = $region20
        $region19: #{tpu_custom_call.1} parent=11 // pred_region
          _
        $region20: #{tpu_custom_call.1} parent=11 // pred_fallthru
          _
        // Predicated region
        $region21: #{tpu_custom_call.1} parent=11 // pred_check
          %p179 = pneg %p101
        $region22: #{tpu_custom_call.1} parent=11 // pred_check_branch
          %181 = sbr.rel (%p179) target = $region24
        $region23: #{tpu_custom_call.1} parent=11 // pred_region
          _
        $region24: #{tpu_custom_call.1} parent=11 // pred_fallthru
          _
        // Predicated region
        $region25: #{tpu_custom_call.1} parent=11 // pred_check
          %p182 = pneg %p122
        $region26: #{tpu_custom_call.1} parent=11 // pred_check_branch
          %184 = sbr.rel (%p182) target = $region28
        $region27: #{tpu_custom_call.1} parent=11 // pred_region
          _
        $region28: #{tpu_custom_call.1} parent=11 // pred_fallthru
          _
      $region12: #{tpu_custom_call.1} parent=5 // pred_fallthru
        _
      %p185 = scmp.lt.s32.totalorder %s12, 2
      // Predicated region
      $region29: #{tpu_custom_call.1} parent=5 // pred_check
        %p186 = pneg %p185
      $region30: #{tpu_custom_call.1} parent=5 // pred_check_branch
        %188 = sbr.rel (%p186) target = $region32
      $region31: #{tpu_custom_call.1} parent=5 // pred_region
        // Predicated region
        $region33: #{tpu_custom_call.1} parent=31 // pred_check
          %p189 = pneg %p32
        $region34: #{tpu_custom_call.1} parent=31 // pred_check_branch
          %191 = sbr.rel (%p189) target = $region36
        $region35: #{tpu_custom_call.1} parent=31 // pred_region
          %s192 = smul.u32 2, %s12
          %s193 = ssub.s32 3, %s192
          %p194 = scmp.lt.s32.totalorder %s193, 2
          %s195 = scalar_select %p194, %s193, 2
          %s196 = smul.u32 128, %s195
          %s197 = smul.u32 %s196, 4
          %p198 = scmp.lt.s32.totalorder %s192, 2
          %s199 = scalar_select %p198, %s192, 2
          %s200 = smul.addr %s199, 4
          %s201 = smul.addr %s200, 8
          %s202 = scalar_lea.vmem %s0, %s201
          %s203 = smul.u32 2, %s12
          %s204 = ssub.s32 3, %s203
          %p205 = scmp.lt.s32.totalorder %s204, 2
          %s206 = scalar_select %p205, %s204, 2
          %s207 = smul.u32 128, %s206
          %s208 = smul.u32 %s207, 4
        $region36: #{tpu_custom_call.1} parent=31 // pred_fallthru
          _
      $region32: #{tpu_custom_call.1} parent=5 // pred_fallthru
        _
      %p209 = scmp.le.s32.totalorder 1, %s12
      %p210 = scmp.lt.s32.totalorder %s12, 3
      %p211 = pnand %p209, %p210
      %p212 = pneg %p211
      // Predicated region
      $region37: #{tpu_custom_call.1} parent=5 // pred_check
        _
      $region38: #{tpu_custom_call.1} parent=5 // pred_check_branch
        %214 = sbr.rel (%p211) target = $region40
      $region39: #{tpu_custom_call.1} parent=5 // pred_region
        %s215 = ssub.s32 %s12, 1
        // Predicated region
        $region41: #{tpu_custom_call.1} parent=39 // pred_check
          %p216 = pneg %p59
        $region42: #{tpu_custom_call.1} parent=39 // pred_check_branch
          %218 = sbr.rel (%p216) target = $region44
        $region43: #{tpu_custom_call.1} parent=39 // pred_region
          %219 = dma.done [#allocation3], 8192
        $region44: #{tpu_custom_call.1} parent=39 // pred_fallthru
          _
        %s220 = smul.u32 2, %s17
        %s221 = ssub.s32 3, %s220
        %p222 = scmp.lt.s32.totalorder %s221, 2
        %s223 = scalar_select %p222, %s221, 2
        %s224 = smul.u32 128, %s223
        %s225 = smul.u32 %s224, 4
        %p226 = scmp.lt.s32.totalorder %s220, 2
        %s227 = scalar_select %p226, %s220, 2
        %s228 = smul.addr %s227, 4
        %s229 = smul.addr %s228, 8
        %s230 = scalar_lea.vmem %s0, %s229
        %p231 = pneg %p38
        %p232 = pneg %p35
        %p233 = pneg %p59
        %p234 = pneg %p56
        %p235 = pneg %p80
        %p236 = pneg %p77
        %p237 = pneg %p101
        %p238 = pneg %p98
        %p239 = pneg %p122
        %p240 = pneg %p119
        %p241 = pneg %p148
        %p242 = pneg %p145
        %s243 = sand.u32 %s135, 1
        %s244 = sand.u32 %s135, 1
        %s245 = smul.addr %s244, 16
        %s246 = scalar_lea.vmem [#allocation4], %s245
        %s247 = smul.u32 2, %s17
        %s248 = ssub.s32 3, %s247
        %p249 = scmp.lt.s32.totalorder %s248, 2
        %s250 = scalar_select %p249, %s248, 2
        %s251 = smul.u32 128, %s250
        %s252 = smul.u32 %s251, 4
        %p253 = scmp.lt.s32.totalorder %s247, 2
        %s254 = scalar_select %p253, %s247, 2
        %s255 = smul.addr %s254, 4
        %s256 = smul.addr %s255, 8
        %s257 = scalar_lea.vmem %s0, %s256
        %s258 = smul.u32 2, %s17
        %s259 = ssub.s32 3, %s258
        %p260 = scmp.lt.s32.totalorder %s259, 2
        %s261 = scalar_select %p260, %s259, 2
        %s262 = smul.u32 128, %s261
        %s263 = smul.u32 %s262, 4
        %s264 = smul.u32 2, %s17
        %s265 = ssub.s32 3, %s264
        %p266 = scmp.lt.s32.totalorder %s265, 2
        %s267 = scalar_select %p266, %s265, 2
        %s268 = smul.u32 128, %s267
        %v270 = vld [vmem:[%s257] sm:$0xff]
        %v271 = vld [vmem:[%s257 + $0x8] sm:$0xff]
        %v272 = vld [vmem:[%s257 + $0x10] sm:$0xff]
        %v273 = vld [vmem:[%s257 + $0x18] sm:$0xff]
        %v274 = vld [vmem:[%s257 + $0x20] sm:$0xff]
        %v275 = vld [vmem:[%s257 + $0x28] sm:$0xff]
        %v276 = vld [vmem:[%s257 + $0x30] sm:$0xff]
        %v277 = vld [vmem:[%s257 + $0x38] sm:$0xff]
        %v278 = vpack.c.bf16 %v274, %v270
        %v279 = vpack.c.bf16 %v275, %v271
        %v280 = vpack.c.bf16 %v276, %v272
        %v281 = vpack.c.bf16 %v277, %v273
        %v282 = vld [vmem:[#allocation2] sm:$0xff]
        %v283 = vld [vmem:[#allocation2 + $0x8] sm:$0xff]
        %v284 = vld [vmem:[#allocation2 + $0x10] sm:$0xff]
        %v285 = vld [vmem:[#allocation2 + $0x18] sm:$0xff]
        %v286 = vld [vmem:[#allocation2 + $0x20] sm:$0xff]
        %v287 = vld [vmem:[#allocation2 + $0x28] sm:$0xff]
        %v288 = vld [vmem:[#allocation2 + $0x30] sm:$0xff]
        %v289 = vld [vmem:[#allocation2 + $0x38] sm:$0xff]
        %v290 = vld [vmem:[#allocation2 + $0x40] sm:$0xff]
        %v291 = vld [vmem:[#allocation2 + $0x48] sm:$0xff]
        %v292 = vld [vmem:[#allocation2 + $0x50] sm:$0xff]
        %v293 = vld [vmem:[#allocation2 + $0x58] sm:$0xff]
        %v294 = vld [vmem:[#allocation2 + $0x60] sm:$0xff]
        %v295 = vld [vmem:[#allocation2 + $0x68] sm:$0xff]
        %v296 = vld [vmem:[#allocation2 + $0x70] sm:$0xff]
        %v297 = vld [vmem:[#allocation2 + $0x78] sm:$0xff]
        %v298 = vld [vmem:[#allocation2 + $0x80] sm:$0xff]
        %v299 = vld [vmem:[#allocation2 + $0x88] sm:$0xff]
        %v300 = vld [vmem:[#allocation2 + $0x90] sm:$0xff]
        %v301 = vld [vmem:[#allocation2 + $0x98] sm:$0xff]
        %v302 = vld [vmem:[#allocation2 + $0xa0] sm:$0xff]
        %v303 = vld [vmem:[#allocation2 + $0xa8] sm:$0xff]
        %v304 = vld [vmem:[#allocation2 + $0xb0] sm:$0xff]
        %v305 = vld [vmem:[#allocation2 + $0xb8] sm:$0xff]
        %v306 = vld [vmem:[#allocation2 + $0xc0] sm:$0xff]
        %v307 = vld [vmem:[#allocation2 + $0xc8] sm:$0xff]
        %v308 = vld [vmem:[#allocation2 + $0xd0] sm:$0xff]
        %v309 = vld [vmem:[#allocation2 + $0xd8] sm:$0xff]
        %v310 = vld [vmem:[#allocation2 + $0xe0] sm:$0xff]
        %v311 = vld [vmem:[#allocation2 + $0xe8] sm:$0xff]
        %v312 = vld [vmem:[#allocation2 + $0xf0] sm:$0xff]
        %v313 = vld [vmem:[#allocation2 + $0xf8] sm:$0xff]
        %v314 = vld [vmem:[#allocation2 + $0x100] sm:$0xff]
        %v315 = vld [vmem:[#allocation2 + $0x108] sm:$0xff]
        %v316 = vld [vmem:[#allocation2 + $0x110] sm:$0xff]
        %v317 = vld [vmem:[#allocation2 + $0x118] sm:$0xff]
        %v318 = vld [vmem:[#allocation2 + $0x120] sm:$0xff]
        %v319 = vld [vmem:[#allocation2 + $0x128] sm:$0xff]
        %v320 = vld [vmem:[#allocation2 + $0x130] sm:$0xff]
        %v321 = vld [vmem:[#allocation2 + $0x138] sm:$0xff]
        %v322 = vld [vmem:[#allocation2 + $0x140] sm:$0xff]
        %v323 = vld [vmem:[#allocation2 + $0x148] sm:$0xff]
        %v324 = vld [vmem:[#allocation2 + $0x150] sm:$0xff]
        %v325 = vld [vmem:[#allocation2 + $0x158] sm:$0xff]
        %v326 = vld [vmem:[#allocation2 + $0x160] sm:$0xff]
        %v327 = vld [vmem:[#allocation2 + $0x168] sm:$0xff]
        %v328 = vld [vmem:[#allocation2 + $0x170] sm:$0xff]
        %v329 = vld [vmem:[#allocation2 + $0x178] sm:$0xff]
        %v330 = vld [vmem:[#allocation2 + $0x180] sm:$0xff]
        %v331 = vld [vmem:[#allocation2 + $0x188] sm:$0xff]
        %v332 = vld [vmem:[#allocation2 + $0x190] sm:$0xff]
        %v333 = vld [vmem:[#allocation2 + $0x198] sm:$0xff]
        %v334 = vld [vmem:[#allocation2 + $0x1a0] sm:$0xff]
        %v335 = vld [vmem:[#allocation2 + $0x1a8] sm:$0xff]
        %v336 = vld [vmem:[#allocation2 + $0x1b0] sm:$0xff]
        %v337 = vld [vmem:[#allocation2 + $0x1b8] sm:$0xff]
        %v338 = vld [vmem:[#allocation2 + $0x1c0] sm:$0xff]
        %v339 = vld [vmem:[#allocation2 + $0x1c8] sm:$0xff]
        %v340 = vld [vmem:[#allocation2 + $0x1d0] sm:$0xff]
        %v341 = vld [vmem:[#allocation2 + $0x1d8] sm:$0xff]
        %v342 = vld [vmem:[#allocation2 + $0x1e0] sm:$0xff]
        %v343 = vld [vmem:[#allocation2 + $0x1e8] sm:$0xff]
        %v344 = vld [vmem:[#allocation2 + $0x1f0] sm:$0xff]
        %v345 = vld [vmem:[#allocation2 + $0x1f8] sm:$0xff]
        %v346 = vld [vmem:[%s2] sm:$0x3]
        %v348 = vlaneseq
        %v349 = vshrl.u32 %v348, 7
        %v350 = vsub.s32 0, %v349
        %v351 = vrot.slane %v346, %v350
        %v352 = vlaneseq
        %v353 = vshrl.u32 %v352, 7
        %v354 = vsub.s32 1, %v353
        %v355 = vrot.slane %v346, %v354
        %v422 = vunpack.c.l.b16 %v282
        %v423 = vunpack.c.h.b16 %v282
        %v424 = vunpack.c.l.b16 %v283
        %v425 = vunpack.c.h.b16 %v283
        %v426 = vunpack.c.l.b16 %v284
        %v427 = vunpack.c.h.b16 %v284
        %v428 = vunpack.c.l.b16 %v285
        %v429 = vunpack.c.h.b16 %v285
        %v430 = vunpack.c.l.b16 %v286
        %v431 = vunpack.c.h.b16 %v286
        %v432 = vunpack.c.l.b16 %v287
        %v433 = vunpack.c.h.b16 %v287
        %v434 = vunpack.c.l.b16 %v288
        %v435 = vunpack.c.h.b16 %v288
        %v436 = vunpack.c.l.b16 %v289
        %v437 = vunpack.c.h.b16 %v289
        %v438 = vunpack.c.l.b16 %v290
        %v439 = vunpack.c.h.b16 %v290
        %v440 = vunpack.c.l.b16 %v291
        %v441 = vunpack.c.h.b16 %v291
        %v442 = vunpack.c.l.b16 %v292
        %v443 = vunpack.c.h.b16 %v292
        %v444 = vunpack.c.l.b16 %v293
        %v445 = vunpack.c.h.b16 %v293
        %v446 = vunpack.c.l.b16 %v294
        %v447 = vunpack.c.h.b16 %v294
        %v448 = vunpack.c.l.b16 %v295
        %v449 = vunpack.c.h.b16 %v295
        %v450 = vunpack.c.l.b16 %v296
        %v451 = vunpack.c.h.b16 %v296
        %v452 = vunpack.c.l.b16 %v297
        %v453 = vunpack.c.h.b16 %v297
        %v454 = vunpack.c.l.b16 %v298
        %v455 = vunpack.c.h.b16 %v298
        %v456 = vunpack.c.l.b16 %v299
        %v457 = vunpack.c.h.b16 %v299
        %v458 = vunpack.c.l.b16 %v300
        %v459 = vunpack.c.h.b16 %v300
        %v460 = vunpack.c.l.b16 %v301
        %v461 = vunpack.c.h.b16 %v301
        %v462 = vunpack.c.l.b16 %v302
        %v463 = vunpack.c.h.b16 %v302
        %v464 = vunpack.c.l.b16 %v303
        %v465 = vunpack.c.h.b16 %v303
        %v466 = vunpack.c.l.b16 %v304
        %v467 = vunpack.c.h.b16 %v304
        %v468 = vunpack.c.l.b16 %v305
        %v469 = vunpack.c.h.b16 %v305
        %v470 = vunpack.c.l.b16 %v306
        %v471 = vunpack.c.h.b16 %v306
        %v472 = vunpack.c.l.b16 %v307
        %v473 = vunpack.c.h.b16 %v307
        %v474 = vunpack.c.l.b16 %v308
        %v475 = vunpack.c.h.b16 %v308
        %v476 = vunpack.c.l.b16 %v309
        %v477 = vunpack.c.h.b16 %v309
        %v478 = vunpack.c.l.b16 %v310
        %v479 = vunpack.c.h.b16 %v310
        %v480 = vunpack.c.l.b16 %v311
        %v481 = vunpack.c.h.b16 %v311
        %v482 = vunpack.c.l.b16 %v312
        %v483 = vunpack.c.h.b16 %v312
        %v484 = vunpack.c.l.b16 %v313
        %v485 = vunpack.c.h.b16 %v313
        %v486 = vunpack.c.l.b16 %v314
        %v487 = vunpack.c.h.b16 %v314
        %v488 = vunpack.c.l.b16 %v315
        %v489 = vunpack.c.h.b16 %v315
        %v490 = vunpack.c.l.b16 %v316
        %v491 = vunpack.c.h.b16 %v316
        %v492 = vunpack.c.l.b16 %v317
        %v493 = vunpack.c.h.b16 %v317
        %v494 = vunpack.c.l.b16 %v318
        %v495 = vunpack.c.h.b16 %v318
        %v496 = vunpack.c.l.b16 %v319
        %v497 = vunpack.c.h.b16 %v319
        %v498 = vunpack.c.l.b16 %v320
        %v499 = vunpack.c.h.b16 %v320
        %v500 = vunpack.c.l.b16 %v321
        %v501 = vunpack.c.h.b16 %v321
        %v502 = vunpack.c.l.b16 %v322
        %v503 = vunpack.c.h.b16 %v322
        %v504 = vunpack.c.l.b16 %v323
        %v505 = vunpack.c.h.b16 %v323
        %v506 = vunpack.c.l.b16 %v324
        %v507 = vunpack.c.h.b16 %v324
        %v508 = vunpack.c.l.b16 %v325
        %v509 = vunpack.c.h.b16 %v325
        %v510 = vunpack.c.l.b16 %v326
        %v511 = vunpack.c.h.b16 %v326
        %v512 = vunpack.c.l.b16 %v327
        %v513 = vunpack.c.h.b16 %v327
        %v514 = vunpack.c.l.b16 %v328
        %v515 = vunpack.c.h.b16 %v328
        %v516 = vunpack.c.l.b16 %v329
        %v517 = vunpack.c.h.b16 %v329
        %v518 = vunpack.c.l.b16 %v330
        %v519 = vunpack.c.h.b16 %v330
        %v520 = vunpack.c.l.b16 %v331
        %v521 = vunpack.c.h.b16 %v331
        %v522 = vunpack.c.l.b16 %v332
        %v523 = vunpack.c.h.b16 %v332
        %v524 = vunpack.c.l.b16 %v333
        %v525 = vunpack.c.h.b16 %v333
        %v526 = vunpack.c.l.b16 %v334
        %v527 = vunpack.c.h.b16 %v334
        %v528 = vunpack.c.l.b16 %v335
        %v529 = vunpack.c.h.b16 %v335
        %v530 = vunpack.c.l.b16 %v336
        %v531 = vunpack.c.h.b16 %v336
        %v532 = vunpack.c.l.b16 %v337
        %v533 = vunpack.c.h.b16 %v337
        %v534 = vunpack.c.l.b16 %v338
        %v535 = vunpack.c.h.b16 %v338
        %v536 = vunpack.c.l.b16 %v339
        %v537 = vunpack.c.h.b16 %v339
        %v538 = vunpack.c.l.b16 %v340
        %v539 = vunpack.c.h.b16 %v340
        %v540 = vunpack.c.l.b16 %v341
        %v541 = vunpack.c.h.b16 %v341
        %v542 = vunpack.c.l.b16 %v342
        %v543 = vunpack.c.h.b16 %v342
        %v544 = vunpack.c.l.b16 %v343
        %v545 = vunpack.c.h.b16 %v343
        %v546 = vunpack.c.l.b16 %v344
        %v547 = vunpack.c.h.b16 %v344
        %v548 = vunpack.c.l.b16 %v345
        %v549 = vunpack.c.h.b16 %v345
        %v550 = vpack.c.b16 %v424, %v422
        %v551 = vpack.c.b16 %v425, %v423
        %v552 = vpack.c.b16 %v428, %v426
        %v553 = vpack.c.b16 %v429, %v427
        %v554 = vpack.c.b16 %v432, %v430
        %v555 = vpack.c.b16 %v433, %v431
        %v556 = vpack.c.b16 %v436, %v434
        %v557 = vpack.c.b16 %v437, %v435
        %v558 = vpack.c.b16 %v440, %v438
        %v559 = vpack.c.b16 %v441, %v439
        %v560 = vpack.c.b16 %v444, %v442
        %v561 = vpack.c.b16 %v445, %v443
        %v562 = vpack.c.b16 %v448, %v446
        %v563 = vpack.c.b16 %v449, %v447
        %v564 = vpack.c.b16 %v452, %v450
        %v565 = vpack.c.b16 %v453, %v451
        %v566 = vpack.c.b16 %v456, %v454
        %v567 = vpack.c.b16 %v457, %v455
        %v568 = vpack.c.b16 %v460, %v458
        %v569 = vpack.c.b16 %v461, %v459
        %v570 = vpack.c.b16 %v464, %v462
        %v571 = vpack.c.b16 %v465, %v463
        %v572 = vpack.c.b16 %v468, %v466
        %v573 = vpack.c.b16 %v469, %v467
        %v574 = vpack.c.b16 %v472, %v470
        %v575 = vpack.c.b16 %v473, %v471
        %v576 = vpack.c.b16 %v476, %v474
        %v577 = vpack.c.b16 %v477, %v475
        %v578 = vpack.c.b16 %v480, %v478
        %v579 = vpack.c.b16 %v481, %v479
        %v580 = vpack.c.b16 %v484, %v482
        %v581 = vpack.c.b16 %v485, %v483
        %v582 = vpack.c.b16 %v488, %v486
        %v583 = vpack.c.b16 %v489, %v487
        %v584 = vpack.c.b16 %v492, %v490
        %v585 = vpack.c.b16 %v493, %v491
        %v586 = vpack.c.b16 %v496, %v494
        %v587 = vpack.c.b16 %v497, %v495
        %v588 = vpack.c.b16 %v500, %v498
        %v589 = vpack.c.b16 %v501, %v499
        %v590 = vpack.c.b16 %v504, %v502
        %v591 = vpack.c.b16 %v505, %v503
        %v592 = vpack.c.b16 %v508, %v506
        %v593 = vpack.c.b16 %v509, %v507
        %v594 = vpack.c.b16 %v512, %v510
        %v595 = vpack.c.b16 %v513, %v511
        %v596 = vpack.c.b16 %v516, %v514
        %v597 = vpack.c.b16 %v517, %v515
        %v598 = vpack.c.b16 %v520, %v518
        %v599 = vpack.c.b16 %v521, %v519
        %v600 = vpack.c.b16 %v524, %v522
        %v601 = vpack.c.b16 %v525, %v523
        %v602 = vpack.c.b16 %v528, %v526
        %v603 = vpack.c.b16 %v529, %v527
        %v604 = vpack.c.b16 %v532, %v530
        %v605 = vpack.c.b16 %v533, %v531
        %v606 = vpack.c.b16 %v536, %v534
        %v607 = vpack.c.b16 %v537, %v535
        %v608 = vpack.c.b16 %v540, %v538
        %v609 = vpack.c.b16 %v541, %v539
        %v610 = vpack.c.b16 %v544, %v542
        %v611 = vpack.c.b16 %v545, %v543
        %v612 = vpack.c.b16 %v548, %v546
        %v613 = vpack.c.b16 %v549, %v547
        %678 = vmatprep.subr.bf16.mxu0 %v551
        %679 = vmatpush1.bf16.msra.mxu0 %v550
        %680 = vmatprep.subr.bf16.mxu0 %v553
        %681 = vmatpush1.bf16.msra.mxu0 %v552
        %682 = vmatprep.subr.bf16.mxu0 %v555
        %683 = vmatpush1.bf16.msra.mxu0 %v554
        %684 = vmatprep.subr.bf16.mxu0 %v557
        %685 = vmatpush1.bf16.msra.mxu0 %v556
        %686 = vmatprep.subr.bf16.mxu0 %v559
        %687 = vmatpush1.bf16.msra.mxu0 %v558
        %688 = vmatprep.subr.bf16.mxu0 %v561
        %689 = vmatpush1.bf16.msra.mxu0 %v560
        %690 = vmatprep.subr.bf16.mxu0 %v563
        %691 = vmatpush1.bf16.msra.mxu0 %v562
        %692 = vmatprep.subr.bf16.mxu0 %v565
        %693 = vmatpush1.bf16.msra.mxu0 %v564
        %694 = vmatprep.subr.bf16.mxu0 %v567
        %695 = vmatpush1.bf16.msra.mxu0 %v566
        %696 = vmatprep.subr.bf16.mxu0 %v569
        %697 = vmatpush1.bf16.msra.mxu0 %v568
        %698 = vmatprep.subr.bf16.mxu0 %v571
        %699 = vmatpush1.bf16.msra.mxu0 %v570
        %700 = vmatprep.subr.bf16.mxu0 %v573
        %701 = vmatpush1.bf16.msra.mxu0 %v572
        %702 = vmatprep.subr.bf16.mxu0 %v575
        %703 = vmatpush1.bf16.msra.mxu0 %v574
        %704 = vmatprep.subr.bf16.mxu0 %v577
        %705 = vmatpush1.bf16.msra.mxu0 %v576
        %706 = vmatprep.subr.bf16.mxu0 %v579
        %707 = vmatpush1.bf16.msra.mxu0 %v578
        %708 = vmatprep.subr.bf16.mxu0 %v581
        %709 = vmatpush1.bf16.msra.mxu0 %v580
        %710 = vmatprep.mubr.bf16.mxu0 %v279
        %711 = vmatmul.mubr.bf16.gmra.mrb[0].mxu0 %v278
        %v712 = vpop.f32.mrb[0].mxu0
        %v713 = vadd.f32 %v351, %v712
        %v714 = vpop.f32.mrb[0].mxu0
        %v715 = vadd.f32 %v355, %v714
        %v716 = vpop.f32.mrb[0].mxu0
        %v717 = vadd.f32 %v351, %v716
        %v718 = vpop.f32.mrb[0].mxu0
        %v719 = vadd.f32 %v355, %v718
        %720 = vdwg.mxu0
        %721 = vmatprep.subr.bf16.mxu0 %v583
        %722 = vmatpush1.bf16.msra.mxu0 %v582
        %723 = vmatprep.subr.bf16.mxu0 %v585
        %724 = vmatpush1.bf16.msra.mxu0 %v584
        %725 = vmatprep.subr.bf16.mxu0 %v587
        %726 = vmatpush1.bf16.msra.mxu0 %v586
        %727 = vmatprep.subr.bf16.mxu0 %v589
        %728 = vmatpush1.bf16.msra.mxu0 %v588
        %729 = vmatprep.subr.bf16.mxu0 %v591
        %730 = vmatpush1.bf16.msra.mxu0 %v590
        %731 = vmatprep.subr.bf16.mxu0 %v593
        %732 = vmatpush1.bf16.msra.mxu0 %v592
        %733 = vmatprep.subr.bf16.mxu0 %v595
        %734 = vmatpush1.bf16.msra.mxu0 %v594
        %735 = vmatprep.subr.bf16.mxu0 %v597
        %736 = vmatpush1.bf16.msra.mxu0 %v596
        %737 = vmatprep.subr.bf16.mxu0 %v599
        %738 = vmatpush1.bf16.msra.mxu0 %v598
        %739 = vmatprep.subr.bf16.mxu0 %v601
        %740 = vmatpush1.bf16.msra.mxu0 %v600
        %741 = vmatprep.subr.bf16.mxu0 %v603
        %742 = vmatpush1.bf16.msra.mxu0 %v602
        %743 = vmatprep.subr.bf16.mxu0 %v605
        %744 = vmatpush1.bf16.msra.mxu0 %v604
        %745 = vmatprep.subr.bf16.mxu0 %v607
        %746 = vmatpush1.bf16.msra.mxu0 %v606
        %747 = vmatprep.subr.bf16.mxu0 %v609
        %748 = vmatpush1.bf16.msra.mxu0 %v608
        %749 = vmatprep.subr.bf16.mxu0 %v611
        %750 = vmatpush1.bf16.msra.mxu0 %v610
        %751 = vmatprep.subr.bf16.mxu0 %v613
        %752 = vmatpush1.bf16.msra.mxu0 %v612
        %753 = vmatprep.mubr.bf16.mxu0 %v281
        %754 = vmatmul.mubr.bf16.gmra.mrb[0].mxu0 %v280
        %v755 = vpop.f32.mrb[0].mxu0
        %v756 = vadd.f32 %v713, %v755
        %v757 = vpop.f32.mrb[0].mxu0
        %v758 = vadd.f32 %v715, %v757
        %v759 = vpop.f32.mrb[0].mxu0
        %v760 = vadd.f32 %v717, %v759
        %v761 = vpop.f32.mrb[0].mxu0
        %v762 = vadd.f32 %v719, %v761
        %763 = vdwg.mxu0
        %v764 = vtanh.pop %v756
        %v765 = vtanh.pop %v758
        %v766 = vtanh.pop %v760
        %v767 = vtanh.pop %v762
        %v768 = vpack.c.bf16 %v766, %v764
        %v769 = vpack.c.bf16 %v767, %v765
        %v770 = vld [vmem:[%s3] sm:$0xf]
        %v771 = vld [vmem:[%s3 + $0x4] sm:$0xf]
        %v772 = vld [vmem:[%s3 + $0x8] sm:$0xf]
        %v773 = vld [vmem:[%s3 + $0xc] sm:$0xf]
        %v774 = vld [vmem:[%s3 + $0x10] sm:$0xf]
        %v775 = vld [vmem:[%s3 + $0x14] sm:$0xf]
        %v776 = vld [vmem:[%s3 + $0x18] sm:$0xf]
        %v777 = vld [vmem:[%s3 + $0x1c] sm:$0xf]
        %v778 = vld [vmem:[%s3 + $0x20] sm:$0xf]
        %v779 = vld [vmem:[%s3 + $0x24] sm:$0xf]
        %v780 = vld [vmem:[%s3 + $0x28] sm:$0xf]
        %v781 = vld [vmem:[%s3 + $0x2c] sm:$0xf]
        %v782 = vld [vmem:[%s3 + $0x30] sm:$0xf]
        %v783 = vld [vmem:[%s3 + $0x34] sm:$0xf]
        %v784 = vld [vmem:[%s3 + $0x38] sm:$0xf]
        %v785 = vld [vmem:[%s3 + $0x3c] sm:$0xf]
        %v786 = vld [vmem:[%s3 + $0x40] sm:$0xf]
        %v787 = vld [vmem:[%s3 + $0x44] sm:$0xf]
        %v788 = vld [vmem:[%s3 + $0x48] sm:$0xf]
        %v789 = vld [vmem:[%s3 + $0x4c] sm:$0xf]
        %v790 = vld [vmem:[%s3 + $0x50] sm:$0xf]
        %v791 = vld [vmem:[%s3 + $0x54] sm:$0xf]
        %v792 = vld [vmem:[%s3 + $0x58] sm:$0xf]
        %v793 = vld [vmem:[%s3 + $0x5c] sm:$0xf]
        %v794 = vld [vmem:[%s3 + $0x60] sm:$0xf]
        %v795 = vld [vmem:[%s3 + $0x64] sm:$0xf]
        %v796 = vld [vmem:[%s3 + $0x68] sm:$0xf]
        %v797 = vld [vmem:[%s3 + $0x6c] sm:$0xf]
        %v798 = vld [vmem:[%s3 + $0x70] sm:$0xf]
        %v799 = vld [vmem:[%s3 + $0x74] sm:$0xf]
        %v800 = vld [vmem:[%s3 + $0x78] sm:$0xf]
        %v801 = vld [vmem:[%s3 + $0x7c] sm:$0xf]
        %v802 = vld [vmem:[%s4] sm:$0x1]
        %v804 = vlaneseq
        %v805 = vshrl.u32 %v804, 7
        %v806 = vsub.s32 0, %v805
        %v807 = vrot.slane %v802, %v806
        %v841 = vunpack.c.l.b16 %v770
        %v842 = vunpack.c.l.b16 %v771
        %v843 = vunpack.c.l.b16 %v772
        %v844 = vunpack.c.l.b16 %v773
        %v845 = vunpack.c.l.b16 %v774
        %v846 = vunpack.c.l.b16 %v775
        %v847 = vunpack.c.l.b16 %v776
        %v848 = vunpack.c.l.b16 %v777
        %v849 = vunpack.c.l.b16 %v778
        %v850 = vunpack.c.l.b16 %v779
        %v851 = vunpack.c.l.b16 %v780
        %v852 = vunpack.c.l.b16 %v781
        %v853 = vunpack.c.l.b16 %v782
        %v854 = vunpack.c.l.b16 %v783
        %v855 = vunpack.c.l.b16 %v784
        %v856 = vunpack.c.l.b16 %v785
        %v857 = vunpack.c.l.b16 %v786
        %v858 = vunpack.c.l.b16 %v787
        %v859 = vunpack.c.l.b16 %v788
        %v860 = vunpack.c.l.b16 %v789
        %v861 = vunpack.c.l.b16 %v790
        %v862 = vunpack.c.l.b16 %v791
        %v863 = vunpack.c.l.b16 %v792
        %v864 = vunpack.c.l.b16 %v793
        %v865 = vunpack.c.l.b16 %v794
        %v866 = vunpack.c.l.b16 %v795
        %v867 = vunpack.c.l.b16 %v796
        %v868 = vunpack.c.l.b16 %v797
        %v869 = vunpack.c.l.b16 %v798
        %v870 = vunpack.c.l.b16 %v799
        %v871 = vunpack.c.l.b16 %v800
        %v872 = vunpack.c.l.b16 %v801
        %v873 = vpack.c.b16 %v842, %v841
        %v874 = vpack.c.b16 %v844, %v843
        %v875 = vpack.c.b16 %v846, %v845
        %v876 = vpack.c.b16 %v848, %v847
        %v877 = vpack.c.b16 %v850, %v849
        %v878 = vpack.c.b16 %v852, %v851
        %v879 = vpack.c.b16 %v854, %v853
        %v880 = vpack.c.b16 %v856, %v855
        %v881 = vpack.c.b16 %v858, %v857
        %v882 = vpack.c.b16 %v860, %v859
        %v883 = vpack.c.b16 %v862, %v861
        %v884 = vpack.c.b16 %v864, %v863
        %v885 = vpack.c.b16 %v866, %v865
        %v886 = vpack.c.b16 %v868, %v867
        %v887 = vpack.c.b16 %v870, %v869
        %v888 = vpack.c.b16 %v872, %v871
        %905 = vmatprep.subr.bf16.mxu0 0
        %906 = vmatpush1.bf16.msra.mxu0 %v873
        %907 = vmatprep.subr.bf16.mxu0 0
        %908 = vmatpush1.bf16.msra.mxu0 %v874
        %909 = vmatprep.subr.bf16.mxu0 0
        %910 = vmatpush1.bf16.msra.mxu0 %v875
        %911 = vmatprep.subr.bf16.mxu0 0
        %912 = vmatpush1.bf16.msra.mxu0 %v876
        %913 = vmatprep.subr.bf16.mxu0 0
        %914 = vmatpush1.bf16.msra.mxu0 %v877
        %915 = vmatprep.subr.bf16.mxu0 0
        %916 = vmatpush1.bf16.msra.mxu0 %v878
        %917 = vmatprep.subr.bf16.mxu0 0
        %918 = vmatpush1.bf16.msra.mxu0 %v879
        %919 = vmatprep.subr.bf16.mxu0 0
        %920 = vmatpush1.bf16.msra.mxu0 %v880
        %921 = vmatprep.subr.bf16.mxu0 0
        %922 = vmatpush1.bf16.msra.mxu0 %v881
        %923 = vmatprep.subr.bf16.mxu0 0
        %924 = vmatpush1.bf16.msra.mxu0 %v882
        %925 = vmatprep.subr.bf16.mxu0 0
        %926 = vmatpush1.bf16.msra.mxu0 %v883
        %927 = vmatprep.subr.bf16.mxu0 0
        %928 = vmatpush1.bf16.msra.mxu0 %v884
        %929 = vmatprep.subr.bf16.mxu0 0
        %930 = vmatpush1.bf16.msra.mxu0 %v885
        %931 = vmatprep.subr.bf16.mxu0 0
        %932 = vmatpush1.bf16.msra.mxu0 %v886
        %933 = vmatprep.subr.bf16.mxu0 0
        %934 = vmatpush1.bf16.msra.mxu0 %v887
        %935 = vmatprep.subr.bf16.mxu0 0
        %936 = vmatpush1.bf16.msra.mxu0 %v888
        %937 = vmatprep.mubr.bf16.mxu0 %v769
        %938 = vmatmul.mubr.bf16.gmra.mrb[0].mxu0 %v768
        %v939 = vpop.f32.mrb[0].mxu0
        %v940 = vadd.f32 %v807, %v939
        %v941 = vpop.f32.mrb[0].mxu0
        %v942 = vpop.f32.mrb[0].mxu0
        %v943 = vadd.f32 %v807, %v942
        %v944 = vpop.f32.mrb[0].mxu0
        %945 = vdwg.mxu0
        %vm946 = vcmask 15360
        %947 = vst.msk [vmem:[%s246] sm:$0xff] %vm946, %v940
        %948 = vst.msk [vmem:[%s246 + $0x8] sm:$0xff] %vm946, %v943
        %s949 = sand.u32 %s135, 1
        %s950 = sand.u32 %s135, 1
        %s951 = smul.addr %s950, 16
        %s952 = scalar_lea.vmem [#allocation4], %s951
        // Predicated region
        $region45: #{tpu_custom_call.1} parent=39 // pred_check
          %p953 = pneg %p145
        $region46: #{tpu_custom_call.1} parent=39 // pred_check_branch
          %955 = sbr.rel (%p953) target = $region48
        $region47: #{tpu_custom_call.1} parent=39 // pred_region
          %s956 = smul.u32 2, %s17
          %s957 = ssub.s32 3, %s956
          %p958 = scmp.lt.s32.totalorder %s957, 2
          %s959 = scalar_select %p958, %s957, 2
          %s960 = smul.u32 128, %s959
          %p961 = scmp.ne.s32.totalorder 0, %s960
          %s962 = smul.addr %s956, 8
          %s963 = scalar_lea.vmem %s5, %s962
          // Predicated region
          $region49: #{tpu_custom_call.1} parent=47 // pred_check
            %p964 = pneg %p961
          $region50: #{tpu_custom_call.1} parent=47 // pred_check_branch
            %966 = sbr.rel (%p964) target = $region52
          $region51: #{tpu_custom_call.1} parent=47 // pred_region
            // Predicated region
            $region53: #{tpu_custom_call.1} parent=51 // pred_check
              _
            $region54: #{tpu_custom_call.1} parent=51 // pred_check_branch
              %968 = sbr.rel (0) target = $region56
            $region55: #{tpu_custom_call.1} parent=51 // pred_region
              // Predicated region
              $region75: #{tpu_custom_call.1} parent=55 // pred_check
                _
              $region76: #{tpu_custom_call.1} parent=55 // pred_check_branch
                %1019 = sbr.rel (0) target = $region78
              $region77: #{tpu_custom_call.1} parent=55 // pred_region
                %s1020 = sshrl.u32 %s959, 1
                // While loop
                $region79: #{tpu_custom_call.1} parent=77 // loop_pre_header
                  _
                $region80: #{tpu_custom_call.1} parent=77 // loop_header
                  %s1022 = sphi 0, %s1024
                  %p1023 = scmp.ge.s32.totalorder %s1022, %s1020
                  %s1027 = sphi 0, %s1036
                  %s1028 = sphi %s952, %s1039
                  %s1029 = sphi %s963, %s1040
                $region81: #{tpu_custom_call.1} parent=77 // loop_header_branch
                  %1026 = sbr.rel (%p1023) target = $region85
                $region82: #{tpu_custom_call.1} parent=77 // loop_body
                  %v1030 = vld [vmem:[%s1028] sm:$0xff]
                  %1031 = vst [vmem:[%s1029] sm:$0xff] %v1030
                  %v1032 = vld [vmem:[%s1028 + $0x8] sm:$0xff]
                  %1033 = vst [vmem:[%s1029 + $0x8] sm:$0xff] %v1032
                  %s1034 = sadd.s32 1, %s1027
                  %p1035 = scmp.ge.s32.totalorder %s1034, %s1020
                  %s1036 = scalar_select %p1035, 0, %s1034
                  %s1037 = smul.u32 %s1036, 16
                  %s1038 = smul.u32 %s1036, 16
                  %s1039 = scalar_lea.vmem %s952, %s1037 [#allocation4]
                  %s1040 = scalar_lea.vmem %s963, %s1038
                $region83: #{tpu_custom_call.1} parent=77 // loop_footer
                  %s1024 = sadd.s32 %s1022, 1
                $region84: #{tpu_custom_call.1} parent=77 // loop_footer_branch
                  %1021 = sbr.rel target = $region80
                $region85: #{tpu_custom_call.1} parent=77 // loop_exit
                  _
                %s1041 = sshrl.u32 %s959, 1
                %s1042 = sand.u32 %s959, 1
                %s1043 = smul.u32 %s1041, 2
                %s1044 = smul.u32 8, %s1043
                %s1045 = scalar_lea.vmem %s952, %s1044 [#allocation4]
                %s1046 = smul.u32 8, %s1043
                %s1047 = scalar_lea.vmem %s963, %s1046
                // While loop
                $region86: #{tpu_custom_call.1} parent=77 // loop_pre_header
                  _
                $region87: #{tpu_custom_call.1} parent=77 // loop_header
                  %s1049 = sphi 0, %s1051
                  %p1050 = scmp.ge.s32.totalorder %s1049, %s1042
                  %s1054 = sphi 0, %s1061
                  %s1055 = sphi %s1045, %s1064
                  %s1056 = sphi %s1047, %s1065
                $region88: #{tpu_custom_call.1} parent=77 // loop_header_branch
                  %1053 = sbr.rel (%p1050) target = $region92
                $region89: #{tpu_custom_call.1} parent=77 // loop_body
                  %v1057 = vld [vmem:[%s1055] sm:$0xff]
                  %1058 = vst [vmem:[%s1056] sm:$0xff] %v1057
                  %s1059 = sadd.s32 1, %s1054
                  %p1060 = scmp.ge.s32.totalorder %s1059, %s1042
                  %s1061 = scalar_select %p1060, 0, %s1059
                  %s1062 = smul.u32 %s1061, 8
                  %s1063 = smul.u32 %s1061, 8
                  %s1064 = scalar_lea.vmem %s1045, %s1062 [#allocation4]
                  %s1065 = scalar_lea.vmem %s1047, %s1063
                $region90: #{tpu_custom_call.1} parent=77 // loop_footer
                  %s1051 = sadd.s32 %s1049, 1
                $region91: #{tpu_custom_call.1} parent=77 // loop_footer_branch
                  %1048 = sbr.rel target = $region87
                $region92: #{tpu_custom_call.1} parent=77 // loop_exit
                  _
              $region78: #{tpu_custom_call.1} parent=55 // pred_fallthru
                _
              // Predicated region
              $region93: #{tpu_custom_call.1} parent=55 // pred_check
                _
              $region94: #{tpu_custom_call.1} parent=55 // pred_check_branch
                %1067 = sbr.rel target = $region96
              $region95: #{tpu_custom_call.1} parent=55 // pred_region
                _
              $region96: #{tpu_custom_call.1} parent=55 // pred_fallthru
                _
            $region56: #{tpu_custom_call.1} parent=51 // pred_fallthru
              _
            // Predicated region
            $region57: #{tpu_custom_call.1} parent=51 // pred_check
              _
            $region58: #{tpu_custom_call.1} parent=51 // pred_check_branch
              %970 = sbr.rel target = $region60
            $region59: #{tpu_custom_call.1} parent=51 // pred_region
              %s972 = sshrl.u32 %s959, 1
              // While loop
              $region61: #{tpu_custom_call.1} parent=59 // loop_pre_header
                _
              $region62: #{tpu_custom_call.1} parent=59 // loop_header
                %s974 = sphi 0, %s976
                %p975 = scmp.ge.s32.totalorder %s974, %s972
                %s979 = sphi 0, %s988
                %s980 = sphi %s952, %s991
                %s981 = sphi %s963, %s992
              $region63: #{tpu_custom_call.1} parent=59 // loop_header_branch
                %978 = sbr.rel (%p975) target = $region67
              $region64: #{tpu_custom_call.1} parent=59 // loop_body
                %v982 = vld [vmem:[%s980] sm:$0xff]
                %983 = vst [vmem:[%s981] sm:$0xff] %v982
                %v984 = vld [vmem:[%s980 + $0x8] sm:$0xff]
                %985 = vst [vmem:[%s981 + $0x8] sm:$0xff] %v984
                %s986 = sadd.s32 1, %s979
                %p987 = scmp.ge.s32.totalorder %s986, %s972
                %s988 = scalar_select %p987, 0, %s986
                %s989 = smul.u32 %s988, 16
                %s990 = smul.u32 %s988, 16
                %s991 = scalar_lea.vmem %s952, %s989 [#allocation4]
                %s992 = scalar_lea.vmem %s963, %s990
              $region65: #{tpu_custom_call.1} parent=59 // loop_footer
                %s976 = sadd.s32 %s974, 1
              $region66: #{tpu_custom_call.1} parent=59 // loop_footer_branch
                %973 = sbr.rel target = $region62
              $region67: #{tpu_custom_call.1} parent=59 // loop_exit
                _
              %s993 = sshrl.u32 %s959, 1
              %s994 = sand.u32 %s959, 1
              %s995 = smul.u32 %s993, 2
              %s996 = smul.u32 8, %s995
              %s997 = scalar_lea.vmem %s952, %s996 [#allocation4]
              %s998 = smul.u32 8, %s995
              %s999 = scalar_lea.vmem %s963, %s998
              // While loop
              $region68: #{tpu_custom_call.1} parent=59 // loop_pre_header
                _
              $region69: #{tpu_custom_call.1} parent=59 // loop_header
                %s1001 = sphi 0, %s1003
                %p1002 = scmp.ge.s32.totalorder %s1001, %s994
                %s1006 = sphi 0, %s1013
                %s1007 = sphi %s997, %s1016
                %s1008 = sphi %s999, %s1017
              $region70: #{tpu_custom_call.1} parent=59 // loop_header_branch
                %1005 = sbr.rel (%p1002) target = $region74
              $region71: #{tpu_custom_call.1} parent=59 // loop_body
                %v1009 = vld [vmem:[%s1007] sm:$0xff]
                %1010 = vst [vmem:[%s1008] sm:$0xff] %v1009
                %s1011 = sadd.s32 1, %s1006
                %p1012 = scmp.ge.s32.totalorder %s1011, %s994
                %s1013 = scalar_select %p1012, 0, %s1011
                %s1014 = smul.u32 %s1013, 8
                %s1015 = smul.u32 %s1013, 8
                %s1016 = scalar_lea.vmem %s997, %s1014 [#allocation4]
                %s1017 = scalar_lea.vmem %s999, %s1015
              $region72: #{tpu_custom_call.1} parent=59 // loop_footer
                %s1003 = sadd.s32 %s1001, 1
              $region73: #{tpu_custom_call.1} parent=59 // loop_footer_branch
                %1000 = sbr.rel target = $region69
              $region74: #{tpu_custom_call.1} parent=59 // loop_exit
                _
            $region60: #{tpu_custom_call.1} parent=51 // pred_fallthru
              _
          $region52: #{tpu_custom_call.1} parent=47 // pred_fallthru
            _
          %1068 = vnop
        $region48: #{tpu_custom_call.1} parent=39 // pred_fallthru
          _
      $region40: #{tpu_custom_call.1} parent=5 // pred_fallthru
        _
      %p1069 = scmp.le.s32.totalorder 2, %s12
      // Predicated region
      $region97: #{tpu_custom_call.1} parent=5 // pred_check
        %p1070 = pneg %p1069
      $region98: #{tpu_custom_call.1} parent=5 // pred_check_branch
        %1072 = sbr.rel (%p1070) target = $region100
      $region99: #{tpu_custom_call.1} parent=5 // pred_region
        %s1073 = ssub.s32 %s12, 2
        // Predicated region
        $region101: #{tpu_custom_call.1} parent=99 // pred_check
          %p1074 = pneg %p151
        $region102: #{tpu_custom_call.1} parent=99 // pred_check_branch
          %1076 = sbr.rel (%p1074) target = $region104
        $region103: #{tpu_custom_call.1} parent=99 // pred_region
          %s1077 = sand.u32 %s136, 1
          %s1078 = sand.u32 %s136, 1
          %s1079 = smul.addr %s1078, 16
          %s1080 = scalar_lea.vmem [#allocation4], %s1079
        $region104: #{tpu_custom_call.1} parent=99 // pred_fallthru
          _
      $region100: #{tpu_custom_call.1} parent=5 // pred_fallthru
        _
    $region6: #{tpu_custom_call.1} parent=1 // loop_footer
      %s16 = sadd.s32 1, %s12
    $region7: #{tpu_custom_call.1} parent=1 // loop_footer_branch
      %11 = sbr.rel target = $region3
    $region8: #{tpu_custom_call.1} parent=1 // loop_exit
      _
    %1081 = vsyncpa [#allocation3], 1
    %s1082 = scalar_lea.sflag [#allocation3], 1
    %1083 = vsyncpa %s1082, 1

</llo_original>
